<compile_context>
chip_gen: v7x
topology: tpu7x:2x2x1
jax: 0.10.0
libtpu: 0.0.40
codegen_flags: <defaults>
</compile_context>

<pallas_src>
import jax
import jax.numpy as jnp
from jax.experimental import pallas as pl
from jax.experimental.pallas import tpu as pltpu


def _round_up(x, m):
    return (x + m - 1) // m * m


def _rnd_mlp_kernel(x_ref, w1_ref, b1_ref, w2_ref, b2_ref, w3_ref, b3_ref, o_ref):
    """Fused 3-layer MLP (Linear->ReLU->Linear->ReLU->Linear), one batch tile/step.

    x arrives already in the compute dtype (cast fused into the wrapper).
    Matmuls accumulate in f32 on the MXU; bias-add / ReLU stay in f32 on the VPU.
    """
    cd = w1_ref.dtype

    # Layer 1: Linear + ReLU
    h1 = jnp.dot(x_ref[...], w1_ref[...],
                 preferred_element_type=jnp.float32) + b1_ref[...]
    h1 = jnp.maximum(h1, 0.0).astype(cd)

    # Layer 2: Linear + ReLU
    h2 = jnp.dot(h1, w2_ref[...],
                 preferred_element_type=jnp.float32) + b2_ref[...]
    h2 = jnp.maximum(h2, 0.0).astype(cd)

    # Layer 3: Linear (no activation)
    out = jnp.dot(h2, w3_ref[...],
                  preferred_element_type=jnp.float32) + b3_ref[...]
    o_ref[...] = out.astype(o_ref.dtype)


def prepare_rnd_params(params, compute_dtype=jnp.bfloat16):
    """Pad / cast parameters once.

    * mid_dim -> multiple of 128 (full MXU tiles; padded hidden units are
      ReLU(0)=0, so numerics are unchanged).
    * state_dim / output_dim are left unpadded when < 128 (full-dim blocks are
      legal) to avoid inflating per-row x HBM traffic and output writeback.
    * Matmul weights stored in compute_dtype (bf16 default); biases stay f32.
    """
    w1, b1 = params["w1"], params["b1"]
    w2, b2 = params["w2"], params["b2"]
    w3, b3 = params["w3"], params["b3"]

    state_dim, mid_dim = w1.shape
    output_dim = w3.shape[1]

    S = state_dim if state_dim < 128 else _round_up(state_dim, 128)
    M = _round_up(mid_dim, 128)
    O = output_dim if output_dim < 128 else _round_up(output_dim, 128)

    def pad2(a, r, c):
        return jnp.pad(a, ((0, r - a.shape[0]), (0, c - a.shape[1])))

    return {
        "w1": pad2(w1, S, M).astype(compute_dtype),
        "b1": pad2(b1.reshape(1, -1), 1, M).astype(jnp.float32),
        "w2": pad2(w2, M, M).astype(compute_dtype),
        "b2": pad2(b2.reshape(1, -1), 1, M).astype(jnp.float32),
        "w3": pad2(w3, M, O).astype(compute_dtype),
        "b3": pad2(b3.reshape(1, -1), 1, O).astype(jnp.float32),
        "dims": (state_dim, mid_dim, output_dim),
    }


def _pick_tb(batch, block_batch):
    """Pick a batch tile TB (multiple of 8), preferring one that divides `batch`
    so the wrapper skips the batch pad (saves a full HBM read+write of x and the
    wasted MXU rows of the last tile). Returns (TB, padded_batch)."""
    block_batch = max(8, (block_batch // 8) * 8)
    if batch >= 8:
        cap = min(block_batch, (batch // 8) * 8)
        for tb in range(cap, 7, -8):
            if batch % tb == 0:
                return tb, batch          # no batch padding needed
    tb = min(block_batch, _round_up(batch, 8))
    return tb, _round_up(batch, tb)


def _weight_spec(shape):
    """Constant-index weight/bias spec: DMA'd once, VMEM-resident across the
    grid, single-buffered (Buffered(1)) so no second weight buffer is allocated."""
    try:
        return pl.BlockSpec(shape, lambda i: (0, 0), pipeline_mode=pl.Buffered(1))
    except (TypeError, AttributeError):
        # Older Pallas without per-spec pipeline_mode: default (double-buffered).
        return pl.BlockSpec(shape, lambda i: (0, 0))


def rnd_forward(state, padded_params, *, block_batch=512):
    """RND forward: state [batch, state_dim] -> [batch, output_dim] f32."""
    state_dim, mid_dim, output_dim = padded_params["dims"]
    w1, b1 = padded_params["w1"], padded_params["b1"]
    w2, b2 = padded_params["w2"], padded_params["b2"]
    w3, b3 = padded_params["w3"], padded_params["b3"]

    S, M = w1.shape
    O = w3.shape[1]
    cdt = w1.dtype                      # compute dtype (bf16 by default)

    batch = state.shape[0]
    TB, batch_p = _pick_tb(batch, block_batch)

    # Cast to the compute dtype in the wrapper (fused with the pad copy when one
    # is needed); skip the pad entirely on the aligned hot path.
    x = state.astype(cdt)
    if batch_p != batch or S != state_dim:
        x = jnp.pad(x, ((0, batch_p - batch), (0, S - state_dim)))

    grid = (batch_p // TB,)

    # Advisory cost estimate + explicit VMEM budget: single-buffered weights,
    # double-buffered x/out tiles, f32 intermediates, compiler-scratch margin.
    flops = 2 * batch_p * (S * M + M * M + M * O)
    param_bytes = sum(int(a.size) * a.dtype.itemsize
                      for a in (w1, b1, w2, b2, w3, b3))
    bytes_accessed = int(x.size) * x.dtype.itemsize + param_bytes + batch_p * O * 4
    vmem_bytes = (
        param_bytes                              # resident weights/biases
        + 2 * TB * S * x.dtype.itemsize          # double-buffered x tiles
        + 2 * TB * O * 4                         # double-buffered out tiles
        + 4 * TB * M * 4                         # h1/h2 f32 + low-precision copies
        + (8 << 20)                              # compiler scratch margin
    )
    # NOTE: v7x has 64 MiB physical VMEM per TC; shrink block_batch / mid_dim
    # tiling if this budget approaches that ceiling.
    vmem_limit = int(min(vmem_bytes, 128 << 20))

    out = pl.pallas_call(
        _rnd_mlp_kernel,
        out_shape=jax.ShapeDtypeStruct((batch_p, O), jnp.float32),
        grid=grid,
        in_specs=[
            pl.BlockSpec((TB, S), lambda i: (i, 0)),   # x: batch-tiled, pipelined
            _weight_spec((S, M)),
            _weight_spec((1, M)),
            _weight_spec((M, M)),
            _weight_spec((1, M)),
            _weight_spec((M, O)),
            _weight_spec((1, O)),
        ],
        out_specs=pl.BlockSpec((TB, O), lambda i: (i, 0)),
        compiler_params=pltpu.CompilerParams(
            # Batch axis shards across both TensorCores on v7x; no-op on v5e/v6e.
            # If a v7x profile shows one idle core, use pltpu.CORE_PARALLEL here.
            dimension_semantics=("parallel",),
            vmem_limit_bytes=vmem_limit,
        ),
        cost_estimate=pl.CostEstimate(
            flops=flops, transcendentals=0, bytes_accessed=bytes_accessed),
    )(x, w1, b1, w2, b2, w3, b3)

    if batch_p != batch or O != output_dim:
        out = out[:batch, :output_dim]
    return out


def init_rnd_params(key, state_dim, mid_dim, output_dim=1):
    """PyTorch-Linear-style uniform fan-in init (f32, unpadded logical shapes)."""
    ks = jax.random.split(key, 6)

    def lin(kw, kb, fan_in, fan_out):
        bound = 1.0 / jnp.sqrt(jnp.float32(fan_in))
        w = jax.random.uniform(kw, (fan_in, fan_out), jnp.float32, -bound, bound)
        b = jax.random.uniform(kb, (1, fan_out), jnp.float32, -bound, bound)
        return w, b

    w1, b1 = lin(ks[0], ks[1], state_dim, mid_dim)
    w2, b2 = lin(ks[2], ks[3], mid_dim, mid_dim)
    w3, b3 = lin(ks[4], ks[5], mid_dim, output_dim)
    return {"w1": w1, "b1": b1, "w2": w2, "b2": b2, "w3": w3, "b3": b3}


def rnd_reference(state, params):
    """Plain-JAX f32 reference for correctness checking."""
    h1 = jnp.maximum(state @ params["w1"] + params["b1"], 0.0)
    h2 = jnp.maximum(h1 @ params["w2"] + params["b2"], 0.0)
    return h2 @ params["w3"] + params["b3"]


if __name__ == "__main__":
    batch, state_dim, mid_dim, output_dim = 2, 16, 32, 1

    key = jax.random.PRNGKey(0)
    k_params, k_state, k_state2 = jax.random.split(key, 3)

    params = init_rnd_params(k_params, state_dim, mid_dim, output_dim)
    state = jax.random.normal(k_state, (batch, state_dim), jnp.float32)

    # 1) f32 compute path: exact match against the reference (single tile,
    #    batch padded 2 -> 8, unpadded state_dim/output_dim blocks).
    pp_f32 = prepare_rnd_params(params, compute_dtype=jnp.float32)
    out = jax.block_until_ready(rnd_forward(state, pp_f32))
    ref = rnd_reference(state, params)
    assert out.shape == (batch, output_dim), out.shape
    assert jnp.allclose(out, ref, atol=1e-5, rtol=1e-5), (out, ref)

    # 2) Default bf16 matmul path on a ragged, multi-tile batch (exercises the
    #    batch grid, weight residency, batch padding, and slice-back).
    batch2 = 300
    state2 = jax.random.normal(k_state2, (batch2, state_dim), jnp.float32)
    pp_bf16 = prepare_rnd_params(params, compute_dtype=jnp.bfloat16)
    out2 = jax.block_until_ready(rnd_forward(state2, pp_bf16, block_batch=128))
    ref2 = rnd_reference(state2, params)
    assert out2.shape == (batch2, output_dim), out2.shape
    assert jnp.allclose(out2, ref2, atol=5e-2, rtol=5e-2), (out2, ref2)

    # 3) Pad-free hot path: tile divides the batch -> wrapper skips jnp.pad.
    batch3 = 256
    state3 = jax.random.normal(k_state2, (batch3, state_dim), jnp.float32)
    out3 = jax.block_until_ready(rnd_forward(state3, pp_bf16, block_batch=128))
    ref3 = rnd_reference(state3, params)
    assert out3.shape == (batch3, output_dim), out3.shape
    assert jnp.allclose(out3, ref3, atol=5e-2, rtol=5e-2), (out3, ref3)

    print("KERNEL_OK")
</pallas_src>

<mosaic_0001>
module attributes {stable_mosaic.version = 11 : i64} {
  func.func @_rnd_mlp_kernel(%arg0: i32, %arg1: memref<8x16xf32, #tpu.memory_space<vmem>>, %arg2: memref<16x128xf32, #tpu.memory_space<vmem>>, %arg3: memref<1x128xf32, #tpu.memory_space<vmem>>, %arg4: memref<128x128xf32, #tpu.memory_space<vmem>>, %arg5: memref<1x128xf32, #tpu.memory_space<vmem>>, %arg6: memref<128x1xf32, #tpu.memory_space<vmem>>, %arg7: memref<1x1xf32, #tpu.memory_space<vmem>>, %arg8: memref<8x1xf32, #tpu.memory_space<vmem>>) attributes {dimension_semantics = [#tpu.dimension_semantics<parallel>], iteration_bounds = array<i64: 1>, scalar_prefetch = 0 : i64, scratch_operands = 0 : i64, tpu.core_type = #tpu.core_type<tc>, window_params = [{transform_indices = @transform_0, window_bounds = array<i64: 8, 16>}, {pipeline_mode = #tpu.pipeline_mode<synchronous>, transform_indices = @transform_1, window_bounds = array<i64: 16, 128>}, {pipeline_mode = #tpu.pipeline_mode<synchronous>, transform_indices = @transform_2, window_bounds = array<i64: 1, 128>}, {pipeline_mode = #tpu.pipeline_mode<synchronous>, transform_indices = @transform_3, window_bounds = array<i64: 128, 128>}, {pipeline_mode = #tpu.pipeline_mode<synchronous>, transform_indices = @transform_4, window_bounds = array<i64: 1, 128>}, {pipeline_mode = #tpu.pipeline_mode<synchronous>, transform_indices = @transform_5, window_bounds = array<i64: 128, 1>}, {pipeline_mode = #tpu.pipeline_mode<synchronous>, transform_indices = @transform_6, window_bounds = array<i64: 1, 1>}, {transform_indices = @transform_7, window_bounds = array<i64: 8, 1>}]} {
    %c0 = arith.constant 0 : index
    %c0_0 = arith.constant 0 : index
    %0 = vector.load %arg1[%c0, %c0_0] : memref<8x16xf32, #tpu.memory_space<vmem>>, vector<8x16xf32>
    %c0_1 = arith.constant 0 : index
    %c0_2 = arith.constant 0 : index
    %1 = vector.load %arg2[%c0_1, %c0_2] : memref<16x128xf32, #tpu.memory_space<vmem>>, vector<16x128xf32>
    %cst = arith.constant dense<0.000000e+00> : vector<8x128xf32>
    %2 = tpu.matmul %0, %1, %cst {dimension_numbers = #tpu.dot_dimension_numbers<[1], [0], [0], [1], [0, 0, 1, 1], [], []>} : vector<8x16xf32>, vector<16x128xf32>, vector<8x128xf32> -> vector<8x128xf32>
    %c0_3 = arith.constant 0 : index
    %c0_4 = arith.constant 0 : index
    %3 = vector.load %arg3[%c0_3, %c0_4] : memref<1x128xf32, #tpu.memory_space<vmem>>, vector<1x128xf32>
    %4 = vector.broadcast %3 : vector<1x128xf32> to vector<8x128xf32>
    %5 = arith.addf %2, %4 : vector<8x128xf32>
    %cst_5 = arith.constant 0.000000e+00 : f32
    %6 = vector.broadcast %cst_5 : f32 to vector<8x128xf32>
    %7 = arith.maximumf %5, %6 : vector<8x128xf32>
    %c0_6 = arith.constant 0 : index
    %c0_7 = arith.constant 0 : index
    %8 = vector.load %arg4[%c0_6, %c0_7] : memref<128x128xf32, #tpu.memory_space<vmem>>, vector<128x128xf32>
    %cst_8 = arith.constant dense<0.000000e+00> : vector<8x128xf32>
    %9 = tpu.matmul %7, %8, %cst_8 {dimension_numbers = #tpu.dot_dimension_numbers<[1], [0], [0], [1], [0, 0, 1, 1], [], []>} : vector<8x128xf32>, vector<128x128xf32>, vector<8x128xf32> -> vector<8x128xf32>
    %c0_9 = arith.constant 0 : index
    %c0_10 = arith.constant 0 : index
    %10 = vector.load %arg5[%c0_9, %c0_10] : memref<1x128xf32, #tpu.memory_space<vmem>>, vector<1x128xf32>
    %11 = vector.broadcast %10 : vector<1x128xf32> to vector<8x128xf32>
    %12 = arith.addf %9, %11 : vector<8x128xf32>
    %cst_11 = arith.constant 0.000000e+00 : f32
    %13 = vector.broadcast %cst_11 : f32 to vector<8x128xf32>
    %14 = arith.maximumf %12, %13 : vector<8x128xf32>
    %c0_12 = arith.constant 0 : index
    %c0_13 = arith.constant 0 : index
    %15 = vector.load %arg6[%c0_12, %c0_13] : memref<128x1xf32, #tpu.memory_space<vmem>>, vector<128x1xf32>
    %cst_14 = arith.constant dense<0.000000e+00> : vector<8x1xf32>
    %16 = tpu.matmul %14, %15, %cst_14 {dimension_numbers = #tpu.dot_dimension_numbers<[1], [0], [0], [1], [0, 0, 1, 1], [], []>} : vector<8x128xf32>, vector<128x1xf32>, vector<8x1xf32> -> vector<8x1xf32>
    %c0_15 = arith.constant 0 : index
    %c0_16 = arith.constant 0 : index
    %17 = vector.load %arg7[%c0_15, %c0_16] : memref<1x1xf32, #tpu.memory_space<vmem>>, vector<1x1xf32>
    %18 = vector.broadcast %17 : vector<1x1xf32> to vector<8x1xf32>
    %19 = arith.addf %16, %18 : vector<8x1xf32>
    %c0_17 = arith.constant 0 : index
    %c0_18 = arith.constant 0 : index
    %20 = vector.load %arg8[%c0_17, %c0_18] : memref<8x1xf32, #tpu.memory_space<vmem>>, vector<8x1xf32>
    tpu.vector_store %arg8[%c0_17, %c0_18], %19 {strides = array<i32>} : memref<8x1xf32, #tpu.memory_space<vmem>>, vector<8x1xf32>,
    return
  }
  func.func @transform_0(%arg0: i32) -> (i32, i32) {
    %c0_i32 = arith.constant 0 : i32
    %c0_i32_0 = arith.constant 0 : i32
    return %arg0, %c0_i32 : i32, i32
  }
  func.func @transform_1(%arg0: i32) -> (i32, i32) {
    %c0_i32 = arith.constant 0 : i32
    %c0_i32_0 = arith.constant 0 : i32
    %c0_i32_1 = arith.constant 0 : i32
    return %c0_i32, %c0_i32_0 : i32, i32
  }
  func.func @transform_2(%arg0: i32) -> (i32, i32) {
    %c0_i32 = arith.constant 0 : i32
    %c0_i32_0 = arith.constant 0 : i32
    %c0_i32_1 = arith.constant 0 : i32
    return %c0_i32, %c0_i32_0 : i32, i32
  }
  func.func @transform_3(%arg0: i32) -> (i32, i32) {
    %c0_i32 = arith.constant 0 : i32
    %c0_i32_0 = arith.constant 0 : i32
    %c0_i32_1 = arith.constant 0 : i32
    return %c0_i32, %c0_i32_0 : i32, i32
  }
  func.func @transform_4(%arg0: i32) -> (i32, i32) {
    %c0_i32 = arith.constant 0 : i32
    %c0_i32_0 = arith.constant 0 : i32
    %c0_i32_1 = arith.constant 0 : i32
    return %c0_i32, %c0_i32_0 : i32, i32
  }
  func.func @transform_5(%arg0: i32) -> (i32, i32) {
    %c0_i32 = arith.constant 0 : i32
    %c0_i32_0 = arith.constant 0 : i32
    %c0_i32_1 = arith.constant 0 : i32
    return %c0_i32, %c0_i32_0 : i32, i32
  }
  func.func @transform_6(%arg0: i32) -> (i32, i32) {
    %c0_i32 = arith.constant 0 : i32
    %c0_i32_0 = arith.constant 0 : i32
    %c0_i32_1 = arith.constant 0 : i32
    return %c0_i32, %c0_i32_0 : i32, i32
  }
  func.func @transform_7(%arg0: i32) -> (i32, i32) {
    %c0_i32 = arith.constant 0 : i32
    %c0_i32_0 = arith.constant 0 : i32
    return %arg0, %c0_i32 : i32, i32
  }
}

</mosaic_0001>

<llo_original>
// kernel: tpu_custom_call.1
$region0: #{tpu_custom_call.1}
  #allocation0 [shape = 'u32[]', space=smem, size = 0x4, offset = 0x4, fixed_abs, tag = 'smem constant byte address 0x4 - core index']
  #allocation1 [shape = 'u32[144,128]{1,0:T(1,128)}', space=vmem, size = 0x12000, scoped, tag = 'internal scratch']
  #allocation2 [shape = 'f32[1,1]{1,0:T(1,128)S(1)}', space=vmem, size = 0x200, scoped, tag = 'scoped memory for tpu_custom_call.1']
  %s0 = inlined_call_operand.hbm [shape: f32[8,16], index: 0, kind: input, shape index: {}]
  %s1 = inlined_call_operand.vmem [shape: f32[16,128], index: 1, kind: input, shape index: {}]
  %s2 = inlined_call_operand.hbm [shape: f32[1,128], index: 2, kind: input, shape index: {}]
  %s3 = inlined_call_operand.vmem [shape: f32[128,128], index: 3, kind: input, shape index: {}]
  %s4 = inlined_call_operand.vmem [shape: f32[1,128], index: 4, kind: input, shape index: {}]
  %s5 = inlined_call_operand.vmem [shape: f32[128,1], index: 5, kind: input, shape index: {}]
  %s6 = inlined_call_operand.<no memory space> [shape: f32[1,1], index: 6, kind: input, shape index: {}]
  %s7 = inlined_call_operand.vmem [shape: f32[8,1], index: 7, kind: output, shape index: {}]
  %s8 = sld [smem:[#allocation0]]
  $region46: #{tpu_custom_call.1} parent=0
    _
  %s10 = ssub.s32 1, %s8
  %s11 = scalar_select 0, %s10, %s8
  %v12 = vstv %s6
  %13 = vst [vmem:[#allocation2] sm:$0x1] %v12
  $region1: #{tpu_custom_call.1} parent=0
    #allocation3 [shape = 'u8[4096]{0}', space=vmem, size = 0x1000, scoped, tag = 'input window, operand 0, single buffered']
    #allocation4 [shape = 's32[1]{0}', space=sflag, size = 0x4, scoped, tag = 'scoped memory for tpu_custom_call.1']
    #allocation5 [shape = 'u8[512]{0}', space=vmem, size = 0x400, scoped, tag = 'input window, operand 2, single buffered']
    #allocation6 [shape = 's32[1]{0}', space=sflag, size = 0x4, scoped, tag = 'scoped memory for tpu_custom_call.1']
    %14 = vsyncpa [#allocation4], 0
    %15 = vsyncpa [#allocation6], 0
    // Predicated region
    $region2: #{tpu_custom_call.1} parent=1 // pred_check
      _
    $region3: #{tpu_custom_call.1} parent=1 // pred_check_branch
      %17 = sbr.rel (0) target = $region5
    $region4: #{tpu_custom_call.1} parent=1 // pred_region
      %s19 = ssub.s32 128, 128
      %20 = vsyncadd [#allocation4], %s19
      %s22 = sshll.u32 [#allocation3], 4
      %s23 = int_to_ptr.vmem [resolvable:$true] %s22
      %25 = dma.hbm_to_vmem [thread:$0]  %s0, 128, %s23, [#allocation4]
    $region5: #{tpu_custom_call.1} parent=1 // pred_fallthru
      _
    // Predicated region
    $region6: #{tpu_custom_call.1} parent=1 // pred_check
      _
    $region7: #{tpu_custom_call.1} parent=1 // pred_check_branch
      %27 = sbr.rel (0) target = $region9
    $region8: #{tpu_custom_call.1} parent=1 // pred_region
      _
    $region9: #{tpu_custom_call.1} parent=1 // pred_fallthru
      _
    // Predicated region
    $region10: #{tpu_custom_call.1} parent=1 // pred_check
      _
    $region11: #{tpu_custom_call.1} parent=1 // pred_check_branch
      %29 = sbr.rel (0) target = $region13
    $region12: #{tpu_custom_call.1} parent=1 // pred_region
      %s31 = ssub.s32 16, 16
      %32 = vsyncadd [#allocation6], %s31
      %s34 = sshll.u32 [#allocation5], 4
      %s35 = int_to_ptr.vmem [resolvable:$true] %s34
      %37 = dma.hbm_to_vmem [thread:$0]  %s2, 16, %s35, [#allocation6]
    $region13: #{tpu_custom_call.1} parent=1 // pred_fallthru
      _
    // Predicated region
    $region14: #{tpu_custom_call.1} parent=1 // pred_check
      _
    $region15: #{tpu_custom_call.1} parent=1 // pred_check_branch
      %39 = sbr.rel (0) target = $region17
    $region16: #{tpu_custom_call.1} parent=1 // pred_region
      _
    $region17: #{tpu_custom_call.1} parent=1 // pred_fallthru
      _
    // Predicated region
    $region18: #{tpu_custom_call.1} parent=1 // pred_check
      _
    $region19: #{tpu_custom_call.1} parent=1 // pred_check_branch
      %41 = sbr.rel (0) target = $region21
    $region20: #{tpu_custom_call.1} parent=1 // pred_region
      _
    $region21: #{tpu_custom_call.1} parent=1 // pred_fallthru
      _
    // Predicated region
    $region22: #{tpu_custom_call.1} parent=1 // pred_check
      _
    $region23: #{tpu_custom_call.1} parent=1 // pred_check_branch
      %43 = sbr.rel (0) target = $region25
    $region24: #{tpu_custom_call.1} parent=1 // pred_region
      _
    $region25: #{tpu_custom_call.1} parent=1 // pred_fallthru
      _
    // Predicated region
    $region26: #{tpu_custom_call.1} parent=1 // pred_check
      _
    $region27: #{tpu_custom_call.1} parent=1 // pred_check_branch
      %45 = sbr.rel (0) target = $region29
    $region28: #{tpu_custom_call.1} parent=1 // pred_region
      _
    $region29: #{tpu_custom_call.1} parent=1 // pred_fallthru
      _
    // Predicated region
    $region30: #{tpu_custom_call.1} parent=1 // pred_check
      _
    $region31: #{tpu_custom_call.1} parent=1 // pred_check_branch
      %47 = sbr.rel (0) target = $region33
    $region32: #{tpu_custom_call.1} parent=1 // pred_region
      %48 = dma.done [#allocation4], 128
    $region33: #{tpu_custom_call.1} parent=1 // pred_fallthru
      _
    // Predicated region
    $region34: #{tpu_custom_call.1} parent=1 // pred_check
      _
    $region35: #{tpu_custom_call.1} parent=1 // pred_check_branch
      %50 = sbr.rel (0) target = $region37
    $region36: #{tpu_custom_call.1} parent=1 // pred_region
      %51 = dma.done [#allocation6], 16
    $region37: #{tpu_custom_call.1} parent=1 // pred_fallthru
      _
    %v52 = vld [vmem:[#allocation3] sm:$0xff]
    %v53 = vld [vmem:[%s1] sm:$0xff]
    %v54 = vld [vmem:[%s1 + $0x8] sm:$0xff]
    %v55 = vld [vmem:[#allocation5] sm:$0x1]
    %v57 = vlaneseq
    %v58 = vshrl.u32 %v57, 7
    %v59 = vsub.s32 0, %v58
    %v60 = vrot.slane %v55, %v59
    %vm62 = vcmask 130048
    %v64 = vsel %vm62, %v52, 0
    %66 = vmatprep.subr.mxu0 0.0
    %67 = vmatpush1.msra.mxu0 %v53
    %68 = vmatprep.subr.mxu0 0.0
    %69 = vmatpush1.msra.mxu0 %v54
    %70 = vmatprep.subr.mxu0 0.0
    %71 = vmatpush1.msra.mxu0 0.0
    %72 = vmatprep.subr.mxu0 0.0
    %73 = vmatpush1.msra.mxu0 0.0
    %74 = vmatprep.subr.mxu0 0.0
    %75 = vmatpush1.msra.mxu0 0.0
    %76 = vmatprep.subr.mxu0 0.0
    %77 = vmatpush1.msra.mxu0 0.0
    %78 = vmatprep.subr.mxu0 0.0
    %79 = vmatpush1.msra.mxu0 0.0
    %80 = vmatprep.subr.mxu0 0.0
    %81 = vmatpush1.msra.mxu0 0.0
    %82 = vmatprep.subr.mxu0 0.0
    %83 = vmatpush1.msra.mxu0 0.0
    %84 = vmatprep.subr.mxu0 0.0
    %85 = vmatpush1.msra.mxu0 0.0
    %86 = vmatprep.subr.mxu0 0.0
    %87 = vmatpush1.msra.mxu0 0.0
    %88 = vmatprep.subr.mxu0 0.0
    %89 = vmatpush1.msra.mxu0 0.0
    %90 = vmatprep.subr.mxu0 0.0
    %91 = vmatpush1.msra.mxu0 0.0
    %92 = vmatprep.subr.mxu0 0.0
    %93 = vmatpush1.msra.mxu0 0.0
    %94 = vmatprep.subr.mxu0 0.0
    %95 = vmatpush1.msra.mxu0 0.0
    %96 = vmatprep.subr.mxu0 0.0
    %97 = vmatpush1.msra.mxu0 0.0
    %98 = vmatprep.subr.mxu0 0.0
    %99 = vmatpush1.msra.mxu0 0.0
    %100 = vmatprep.subr.mxu0 0.0
    %101 = vmatpush1.msra.mxu0 0.0
    %102 = vmatprep.subr.mxu0 0.0
    %103 = vmatpush1.msra.mxu0 0.0
    %104 = vmatprep.subr.mxu0 0.0
    %105 = vmatpush1.msra.mxu0 0.0
    %106 = vmatprep.subr.mxu0 0.0
    %107 = vmatpush1.msra.mxu0 0.0
    %108 = vmatprep.subr.mxu0 0.0
    %109 = vmatpush1.msra.mxu0 0.0
    %110 = vmatprep.subr.mxu0 0.0
    %111 = vmatpush1.msra.mxu0 0.0
    %112 = vmatprep.subr.mxu0 0.0
    %113 = vmatpush1.msra.mxu0 0.0
    %114 = vmatprep.subr.mxu0 0.0
    %115 = vmatpush1.msra.mxu0 0.0
    %116 = vmatprep.subr.mxu0 0.0
    %117 = vmatpush1.msra.mxu0 0.0
    %118 = vmatprep.subr.mxu0 0.0
    %119 = vmatpush1.msra.mxu0 0.0
    %120 = vmatprep.subr.mxu0 0.0
    %121 = vmatpush1.msra.mxu0 0.0
    %122 = vmatprep.subr.mxu0 0.0
    %123 = vmatpush1.msra.mxu0 0.0
    %124 = vmatprep.subr.mxu0 0.0
    %125 = vmatpush1.msra.mxu0 0.0
    %126 = vmatprep.subr.mxu0 0.0
    %127 = vmatpush1.msra.mxu0 0.0
    %128 = vmatprep.subr.mxu0 0.0
    %129 = vmatpush1.msra.mxu0 0.0
    %130 = vmatprep.mubr.f32.mxu0 0.0
    %131 = vmatmul.mubr.f32.gmra.mrb[0].mxu0 %v64
    %v132 = vpop.f32.mrb[0].mxu0
    %v133 = vadd.f32 %v60, %v132
    %v134 = vpop.f32.mrb[0].mxu0
    %135 = vdwg.mxu0
    %v136 = vmax.f32 %v133, 0.0
    %v137 = vld [vmem:[%s3] sm:$0xff]
    %v138 = vld [vmem:[%s3 + $0x8] sm:$0xff]
    %v139 = vld [vmem:[%s3 + $0x10] sm:$0xff]
    %v140 = vld [vmem:[%s3 + $0x18] sm:$0xff]
    %v141 = vld [vmem:[%s3 + $0x20] sm:$0xff]
    %v142 = vld [vmem:[%s3 + $0x28] sm:$0xff]
    %v143 = vld [vmem:[%s3 + $0x30] sm:$0xff]
    %v144 = vld [vmem:[%s3 + $0x38] sm:$0xff]
    %v145 = vld [vmem:[%s3 + $0x40] sm:$0xff]
    %v146 = vld [vmem:[%s3 + $0x48] sm:$0xff]
    %v147 = vld [vmem:[%s3 + $0x50] sm:$0xff]
    %v148 = vld [vmem:[%s3 + $0x58] sm:$0xff]
    %v149 = vld [vmem:[%s3 + $0x60] sm:$0xff]
    %v150 = vld [vmem:[%s3 + $0x68] sm:$0xff]
    %v151 = vld [vmem:[%s3 + $0x70] sm:$0xff]
    %v152 = vld [vmem:[%s3 + $0x78] sm:$0xff]
    %v153 = vld [vmem:[%s4] sm:$0x1]
    %v155 = vlaneseq
    %v156 = vshrl.u32 %v155, 7
    %v157 = vsub.s32 0, %v156
    %v158 = vrot.slane %v153, %v157
    %160 = vmatprep.subr.mxu0 0.0
    %161 = vmatpush1.msra.mxu0 %v137
    %162 = vmatprep.subr.mxu0 0.0
    %163 = vmatpush1.msra.mxu0 %v138
    %164 = vmatprep.subr.mxu0 0.0
    %165 = vmatpush1.msra.mxu0 %v139
    %166 = vmatprep.subr.mxu0 0.0
    %167 = vmatpush1.msra.mxu0 %v140
    %168 = vmatprep.subr.mxu0 0.0
    %169 = vmatpush1.msra.mxu0 %v141
    %170 = vmatprep.subr.mxu0 0.0
    %171 = vmatpush1.msra.mxu0 %v142
    %172 = vmatprep.subr.mxu0 0.0
    %173 = vmatpush1.msra.mxu0 %v143
    %174 = vmatprep.subr.mxu0 0.0
    %175 = vmatpush1.msra.mxu0 %v144
    %176 = vmatprep.subr.mxu0 0.0
    %177 = vmatpush1.msra.mxu0 %v145
    %178 = vmatprep.subr.mxu0 0.0
    %179 = vmatpush1.msra.mxu0 %v146
    %180 = vmatprep.subr.mxu0 0.0
    %181 = vmatpush1.msra.mxu0 %v147
    %182 = vmatprep.subr.mxu0 0.0
    %183 = vmatpush1.msra.mxu0 %v148
    %184 = vmatprep.subr.mxu0 0.0
    %185 = vmatpush1.msra.mxu0 %v149
    %186 = vmatprep.subr.mxu0 0.0
    %187 = vmatpush1.msra.mxu0 %v150
    %188 = vmatprep.subr.mxu0 0.0
    %189 = vmatpush1.msra.mxu0 %v151
    %190 = vmatprep.subr.mxu0 0.0
    %191 = vmatpush1.msra.mxu0 %v152
    %192 = vmatprep.subr.mxu0 0.0
    %193 = vmatpush1.msra.mxu0 0.0
    %194 = vmatprep.subr.mxu0 0.0
    %195 = vmatpush1.msra.mxu0 0.0
    %196 = vmatprep.subr.mxu0 0.0
    %197 = vmatpush1.msra.mxu0 0.0
    %198 = vmatprep.subr.mxu0 0.0
    %199 = vmatpush1.msra.mxu0 0.0
    %200 = vmatprep.subr.mxu0 0.0
    %201 = vmatpush1.msra.mxu0 0.0
    %202 = vmatprep.subr.mxu0 0.0
    %203 = vmatpush1.msra.mxu0 0.0
    %204 = vmatprep.subr.mxu0 0.0
    %205 = vmatpush1.msra.mxu0 0.0
    %206 = vmatprep.subr.mxu0 0.0
    %207 = vmatpush1.msra.mxu0 0.0
    %208 = vmatprep.subr.mxu0 0.0
    %209 = vmatpush1.msra.mxu0 0.0
    %210 = vmatprep.subr.mxu0 0.0
    %211 = vmatpush1.msra.mxu0 0.0
    %212 = vmatprep.subr.mxu0 0.0
    %213 = vmatpush1.msra.mxu0 0.0
    %214 = vmatprep.subr.mxu0 0.0
    %215 = vmatpush1.msra.mxu0 0.0
    %216 = vmatprep.subr.mxu0 0.0
    %217 = vmatpush1.msra.mxu0 0.0
    %218 = vmatprep.subr.mxu0 0.0
    %219 = vmatpush1.msra.mxu0 0.0
    %220 = vmatprep.subr.mxu0 0.0
    %221 = vmatpush1.msra.mxu0 0.0
    %222 = vmatprep.subr.mxu0 0.0
    %223 = vmatpush1.msra.mxu0 0.0
    %224 = vmatprep.mubr.f32.mxu0 0.0
    %225 = vmatmul.mubr.f32.gmra.mrb[0].mxu0 %v136
    %v226 = vpop.f32.mrb[0].mxu0
    %v227 = vadd.f32 %v158, %v226
    %v228 = vpop.f32.mrb[0].mxu0
    %229 = vdwg.mxu0
    %v230 = vmax.f32 %v227, 0.0
    %v231 = vld [vmem:[%s5] sm:$0xff]
    %v232 = vld [vmem:[%s5 + $0x8] sm:$0xff]
    %v233 = vld [vmem:[%s5 + $0x10] sm:$0xff]
    %v234 = vld [vmem:[%s5 + $0x18] sm:$0xff]
    %v235 = vld [vmem:[%s5 + $0x20] sm:$0xff]
    %v236 = vld [vmem:[%s5 + $0x28] sm:$0xff]
    %v237 = vld [vmem:[%s5 + $0x30] sm:$0xff]
    %v238 = vld [vmem:[%s5 + $0x38] sm:$0xff]
    %v239 = vld [vmem:[%s5 + $0x40] sm:$0xff]
    %v240 = vld [vmem:[%s5 + $0x48] sm:$0xff]
    %v241 = vld [vmem:[%s5 + $0x50] sm:$0xff]
    %v242 = vld [vmem:[%s5 + $0x58] sm:$0xff]
    %v243 = vld [vmem:[%s5 + $0x60] sm:$0xff]
    %v244 = vld [vmem:[%s5 + $0x68] sm:$0xff]
    %v245 = vld [vmem:[%s5 + $0x70] sm:$0xff]
    %v246 = vld [vmem:[%s5 + $0x78] sm:$0xff]
    %v247 = vld [vmem:[#allocation2] sm:$0x1]
    %v249 = vlaneseq
    %v250 = vshrl.u32 %v249, 7
    %v251 = vsub.s32 0, %v250
    %v252 = vrot.slane %v247, %v251
    %254 = vmatprep.subr.mxu0 0.0
    %255 = vmatpush1.msra.mxu0 %v231
    %256 = vmatprep.subr.mxu0 0.0
    %257 = vmatpush1.msra.mxu0 %v232
    %258 = vmatprep.subr.mxu0 0.0
    %259 = vmatpush1.msra.mxu0 %v233
    %260 = vmatprep.subr.mxu0 0.0
    %261 = vmatpush1.msra.mxu0 %v234
    %262 = vmatprep.subr.mxu0 0.0
    %263 = vmatpush1.msra.mxu0 %v235
    %264 = vmatprep.subr.mxu0 0.0
    %265 = vmatpush1.msra.mxu0 %v236
    %266 = vmatprep.subr.mxu0 0.0
    %267 = vmatpush1.msra.mxu0 %v237
    %268 = vmatprep.subr.mxu0 0.0
    %269 = vmatpush1.msra.mxu0 %v238
    %270 = vmatprep.subr.mxu0 0.0
    %271 = vmatpush1.msra.mxu0 %v239
    %272 = vmatprep.subr.mxu0 0.0
    %273 = vmatpush1.msra.mxu0 %v240
    %274 = vmatprep.subr.mxu0 0.0
    %275 = vmatpush1.msra.mxu0 %v241
    %276 = vmatprep.subr.mxu0 0.0
    %277 = vmatpush1.msra.mxu0 %v242
    %278 = vmatprep.subr.mxu0 0.0
    %279 = vmatpush1.msra.mxu0 %v243
    %280 = vmatprep.subr.mxu0 0.0
    %281 = vmatpush1.msra.mxu0 %v244
    %282 = vmatprep.subr.mxu0 0.0
    %283 = vmatpush1.msra.mxu0 %v245
    %284 = vmatprep.subr.mxu0 0.0
    %285 = vmatpush1.msra.mxu0 %v246
    %286 = vmatprep.subr.mxu0 0.0
    %287 = vmatpush1.msra.mxu0 0.0
    %288 = vmatprep.subr.mxu0 0.0
    %289 = vmatpush1.msra.mxu0 0.0
    %290 = vmatprep.subr.mxu0 0.0
    %291 = vmatpush1.msra.mxu0 0.0
    %292 = vmatprep.subr.mxu0 0.0
    %293 = vmatpush1.msra.mxu0 0.0
    %294 = vmatprep.subr.mxu0 0.0
    %295 = vmatpush1.msra.mxu0 0.0
    %296 = vmatprep.subr.mxu0 0.0
    %297 = vmatpush1.msra.mxu0 0.0
    %298 = vmatprep.subr.mxu0 0.0
    %299 = vmatpush1.msra.mxu0 0.0
    %300 = vmatprep.subr.mxu0 0.0
    %301 = vmatpush1.msra.mxu0 0.0
    %302 = vmatprep.subr.mxu0 0.0
    %303 = vmatpush1.msra.mxu0 0.0
    %304 = vmatprep.subr.mxu0 0.0
    %305 = vmatpush1.msra.mxu0 0.0
    %306 = vmatprep.subr.mxu0 0.0
    %307 = vmatpush1.msra.mxu0 0.0
    %308 = vmatprep.subr.mxu0 0.0
    %309 = vmatpush1.msra.mxu0 0.0
    %310 = vmatprep.subr.mxu0 0.0
    %311 = vmatpush1.msra.mxu0 0.0
    %312 = vmatprep.subr.mxu0 0.0
    %313 = vmatpush1.msra.mxu0 0.0
    %314 = vmatprep.subr.mxu0 0.0
    %315 = vmatpush1.msra.mxu0 0.0
    %316 = vmatprep.subr.mxu0 0.0
    %317 = vmatpush1.msra.mxu0 0.0
    %318 = vmatprep.mubr.f32.mxu0 0.0
    %319 = vmatmul.mubr.f32.gmra.mrb[0].mxu0 %v230
    %v320 = vpop.f32.mrb[0].mxu0
    %v321 = vadd.f32 %v252, %v320
    %v322 = vpop.f32.mrb[0].mxu0
    %323 = vdwg.mxu0
    %vm324 = vcmask 7168
    %325 = vst.msk [vmem:[%s7] sm:$0xff] %vm324, %v321
    // Predicated region
    $region38: #{tpu_custom_call.1} parent=1 // pred_check
      _
    $region39: #{tpu_custom_call.1} parent=1 // pred_check_branch
      %327 = sbr.rel (0) target = $region41
    $region40: #{tpu_custom_call.1} parent=1 // pred_region
      _
    $region41: #{tpu_custom_call.1} parent=1 // pred_fallthru
      _
    // Predicated region
    $region42: #{tpu_custom_call.1} parent=1 // pred_check
      _
    $region43: #{tpu_custom_call.1} parent=1 // pred_check_branch
      %329 = sbr.rel (0) target = $region45
    $region44: #{tpu_custom_call.1} parent=1 // pred_region
      _
    $region45: #{tpu_custom_call.1} parent=1 // pred_fallthru
      _
    %330 = vsyncpa [#allocation4], 1
    %331 = vsyncpa [#allocation6], 1

</llo_original>
